<compile_context>
chip_gen: v6e
topology: v6e:2x2x1
jax: 0.10.0
libtpu: 0.0.40
codegen_flags: <defaults>
</compile_context>

<pallas_src>
import functools
import math

import jax
import jax.numpy as jnp
from jax.experimental import pallas as pl
from jax.experimental.pallas import tpu as pltpu


def _round_up(x, m):
    return ((x + m - 1) // m) * m


# --------------------------------------------------------------------------
# Kernel
# --------------------------------------------------------------------------
def _mlp_kernel(x_ref, w1_ref, b1_ref, w2_ref, b2_ref, w3_ref, b3_ref,
                o_ref, h1_ref, acc_ref):
    j = pl.program_id(1)

    @pl.when(j == 0)
    def _():
        # fc1 + bias + ReLU, once per row tile; result lives in VMEM scratch
        # in the compute dtype for the rest of the slab sweep.
        h1 = jnp.dot(x_ref[...], w1_ref[...], preferred_element_type=jnp.float32)
        h1 = jnp.maximum(h1 + b1_ref[...].astype(jnp.float32), 0.0)
        h1_ref[...] = h1.astype(h1_ref.dtype)
        acc_ref[...] = jnp.zeros_like(acc_ref)

    # fc2 column slab (+bias+ReLU) immediately contracted against the matching
    # W3 row slab; fc3 accumulates in f32 scratch across the slab axis.
    h2 = jnp.dot(h1_ref[...], w2_ref[...], preferred_element_type=jnp.float32)
    h2 = jnp.maximum(h2 + b2_ref[...].astype(jnp.float32), 0.0)
    acc_ref[...] += jnp.dot(h2.astype(w3_ref.dtype), w3_ref[...],
                            preferred_element_type=jnp.float32)

    @pl.when(j == pl.num_programs(1) - 1)
    def _():
        o_ref[...] = (acc_ref[...] + b3_ref[...].astype(jnp.float32)).astype(o_ref.dtype)


# --------------------------------------------------------------------------
# VMEM budgeting / slab selection (trace-time, generation-aware)
# --------------------------------------------------------------------------
def _vmem_budget_bytes():
    cap = None
    try:
        cap = getattr(pltpu.get_tpu_info(), "vmem_capacity_bytes", None)
    except Exception:
        cap = None
    if not cap:
        cap = 128 << 20  # v5e/v6e default
    cap = int(cap)
    # Leave headroom for compiler-internal scratch (v7x: 64MiB -> ~52MiB budget).
    return max(cap - (12 << 20), cap // 2)


def _resident_bytes(bm, in_dim, hid, slab, out_pad, w_bytes, x_bytes, o_bytes, h_bytes):
    # Pallas allocates 2 pipeline buffers per operand (revisited constant-index
    # blocks skip the DMA, but not the allocation).
    weights = 2 * w_bytes * (in_dim * hid + hid * slab + slab * out_pad)
    biases = 2 * 4 * (hid + slab + out_pad)
    io = 2 * bm * (in_dim * x_bytes + out_pad * o_bytes)
    scratch = bm * hid * h_bytes + bm * out_pad * 4
    return weights + biases + io + scratch


def _slab_candidates(hid):
    cands = {hid}
    d = 128
    while d < hid:
        if hid % d == 0:
            cands.add(d)
        d += 128
    return sorted(cands, reverse=True)


def _pick_slab(hid, grid_m, budget, size_fn, slab=None):
    if slab is not None:
        assert hid % slab == 0 and (slab == hid or slab % 128 == 0), \
            "slab must divide hidden_dim and be a multiple of 128"
        return slab
    # Small grids: stream <=512-wide slabs so weight DMA overlaps the MXU.
    # Large grids: keep weights fully resident (one-time fetch, amortized).
    target = hid if grid_m >= 4 else min(hid, 512)
    cands = [c for c in _slab_candidates(hid) if c <= target] or [hid]
    for c in cands:
        if size_fn(c) <= budget:
            return c
    return cands[-1]


# --------------------------------------------------------------------------
# Parameter prep (hoisted out of the forward path; call once, cache result)
# --------------------------------------------------------------------------
def prepare_params(params, *, compute_dtype=jnp.bfloat16):
    """Cast weights to the MXU compute dtype (bf16 default), pad fc3's output
    dim to a multiple of 128 (lane-dense stores) and reshape biases to (1, N).
    Biases stay f32: the bias+ReLU epilogue runs in f32 on the VPU."""
    w1, b1, w2, b2, w3, b3 = params
    out_dim_full = w3.shape[1]
    out_pad = _round_up(out_dim_full, 128)
    if out_pad != out_dim_full:
        w3 = jnp.pad(w3, ((0, 0), (0, out_pad - out_dim_full)))
        b3 = jnp.pad(b3.reshape(-1), (0, out_pad - out_dim_full))
    w1 = w1.astype(compute_dtype)
    w2 = w2.astype(compute_dtype)
    w3 = w3.astype(compute_dtype)
    b1 = b1.reshape(1, -1).astype(jnp.float32)
    b2 = b2.reshape(1, -1).astype(jnp.float32)
    b3 = b3.reshape(1, -1).astype(jnp.float32)
    return (w1, b1, w2, b2, w3, b3)


# --------------------------------------------------------------------------
# Forward
# --------------------------------------------------------------------------
def _mlp_forward_impl(x, params, *, prefix_len, output_dim, bm=None, slab=None):
    w1, b1, w2, b2, w3, b3 = params
    b1 = b1.reshape(1, -1).astype(jnp.float32)
    b2 = b2.reshape(1, -1).astype(jnp.float32)
    b3 = b3.reshape(1, -1).astype(jnp.float32)

    orig_ndim = x.ndim
    out_dtype = x.dtype
    if orig_ndim == 3:
        # The torch reshape (B, S, output_dim*prefix_len) -> (B, S, output_dim)
        # is only element-count-consistent when prefix_len == 1.
        assert prefix_len == 1, "3-D input requires prefix_len == 1"
        B, S, D = x.shape
        x2d = x.reshape(B * S, D)
    else:
        B, D = x.shape
        S = None
        x2d = x

    compute_dtype = w1.dtype
    x2d = x2d.astype(compute_dtype)

    M = x2d.shape[0]
    in_dim, hid = w1.shape
    out_pad = w3.shape[1]                      # padded by prepare_params
    out_dim_full = output_dim * prefix_len

    budget = _vmem_budget_bytes()
    if bm is None:
        bm = 512 if budget >= (96 << 20) else 256   # bigger row tiles on v5e/v6e

    # Row tiling (pad M up to a multiple of the row tile).
    bm_eff = min(bm, _round_up(max(M, 1), 8))
    bm_eff = _round_up(bm_eff, 8)
    M_pad = _round_up(M, bm_eff)
    if M_pad != M:
        x2d = jnp.pad(x2d, ((0, M_pad - M), (0, 0)))
    grid_m = M_pad // bm_eff

    w_bytes = jnp.dtype(compute_dtype).itemsize
    o_bytes = jnp.dtype(out_dtype).itemsize
    size_fn = lambda s: _resident_bytes(bm_eff, in_dim, hid, s, out_pad,
                                        w_bytes, w_bytes, o_bytes, w_bytes)
    slab_eff = _pick_slab(hid, grid_m, budget, size_fn, slab)
    n_slabs = hid // slab_eff

    vmem_limit = min(budget, max(32 << 20, int(size_fn(slab_eff) * 1.25) + (2 << 20)))

    out = pl.pallas_call(
        _mlp_kernel,
        out_shape=jax.ShapeDtypeStruct((M_pad, out_pad), out_dtype),
        grid_spec=pltpu.PrefetchScalarGridSpec(
            num_scalar_prefetch=0,
            grid=(grid_m, n_slabs),
            in_specs=[
                pl.BlockSpec((bm_eff, in_dim), lambda i, j: (i, 0)),      # x rows
                pl.BlockSpec((in_dim, hid), lambda i, j: (0, 0)),         # W1 (fetched once)
                pl.BlockSpec((1, hid), lambda i, j: (0, 0)),              # b1
                pl.BlockSpec((hid, slab_eff), lambda i, j: (0, j)),       # W2 column slab
                pl.BlockSpec((1, slab_eff), lambda i, j: (0, j)),         # b2 slab
                pl.BlockSpec((slab_eff, out_pad), lambda i, j: (j, 0)),   # W3 row slab
                pl.BlockSpec((1, out_pad), lambda i, j: (0, 0)),          # b3
            ],
            out_specs=pl.BlockSpec((bm_eff, out_pad), lambda i, j: (i, 0)),
            scratch_shapes=[
                pltpu.VMEM((bm_eff, hid), compute_dtype),       # h1 (resident across j)
                pltpu.VMEM((bm_eff, out_pad), jnp.float32),     # fc3 accumulator
            ],
        ),
        compiler_params=pltpu.CompilerParams(
            dimension_semantics=(
                "parallel" if grid_m >= 4 else "arbitrary",  # megacore only when it pays
                "arbitrary",                                  # reduction over weight slabs
            ),
            vmem_limit_bytes=vmem_limit,
        ),
    )(x2d, w1, b1, w2, b2, w3, b3)

    out = out[:M, :out_dim_full]
    if orig_ndim == 3:
        return out.reshape(B, S, output_dim)
    return out.reshape(B, prefix_len, output_dim)


mlp_forward = jax.jit(
    _mlp_forward_impl,
    static_argnames=("prefix_len", "output_dim", "bm", "slab"),
)


# --------------------------------------------------------------------------
# Param init (PyTorch-Linear-like uniform fan-in scaling), weights as (in, out)
# --------------------------------------------------------------------------
def init_params(key, input_dim, hidden_dim, output_dim, prefix_len, dtype=jnp.float32):
    ks = jax.random.split(key, 6)

    def linear(kw, kb, fan_in, fan_out):
        bound = 1.0 / math.sqrt(fan_in)
        w = jax.random.uniform(kw, (fan_in, fan_out), dtype, -bound, bound)
        b = jax.random.uniform(kb, (fan_out,), dtype, -bound, bound)
        return w, b

    w1, b1 = linear(ks[0], ks[1], input_dim, hidden_dim)
    w2, b2 = linear(ks[2], ks[3], hidden_dim, hidden_dim)
    w3, b3 = linear(ks[4], ks[5], hidden_dim, output_dim * prefix_len)
    return (w1, b1, w2, b2, w3, b3)


if __name__ == "__main__":
    # Small shapes consistent with the module (scaled down from 512/2048/768).
    INPUT_DIM = 128
    HIDDEN_DIM = 256
    OUTPUT_DIM = 128
    PREFIX_LEN = 2
    BATCH = 8

    key = jax.random.PRNGKey(0)
    kx, kp, kx2 = jax.random.split(key, 3)
    x = jax.random.normal(kx, (BATCH, INPUT_DIM), dtype=jnp.float32)
    raw = init_params(kp, INPUT_DIM, HIDDEN_DIM, OUTPUT_DIM, PREFIX_LEN)

    # Plain-JAX reference (f32).
    w1, b1, w2, b2, w3, b3 = raw
    h = jnp.maximum(x @ w1 + b1, 0.0)
    h = jnp.maximum(h @ w2 + b2, 0.0)
    ref = (h @ w3 + b3).reshape(BATCH, PREFIX_LEN, OUTPUT_DIM)

    # 1) f32 compute path, forced 2-slab streaming (exercises the accumulator).
    p32 = prepare_params(raw, compute_dtype=jnp.float32)
    out32 = jax.block_until_ready(
        mlp_forward(x, p32, prefix_len=PREFIX_LEN, output_dim=OUTPUT_DIM, slab=128))
    assert out32.shape == (BATCH, PREFIX_LEN, OUTPUT_DIM), out32.shape
    assert jnp.allclose(out32, ref, atol=1e-4, rtol=1e-4), \
        float(jnp.max(jnp.abs(out32 - ref)))

    # 2) Default bf16 compute path (production default), default slab choice.
    pbf = prepare_params(raw)  # bf16 weights, padded/ reshaped once
    outbf = jax.block_until_ready(
        mlp_forward(x, pbf, prefix_len=PREFIX_LEN, output_dim=OUTPUT_DIM))
    assert outbf.shape == (BATCH, PREFIX_LEN, OUTPUT_DIM), outbf.shape
    assert jnp.allclose(outbf.astype(jnp.float32), ref, atol=1e-1, rtol=5e-2), \
        float(jnp.max(jnp.abs(outbf.astype(jnp.float32) - ref)))

    # 3) 3-D input path (torch's 3-D branch implies prefix_len == 1) with a
    #    batch*seq count that is not a multiple of the row tile (padding path).
    PREFIX_1 = 1
    raw1 = init_params(kp, INPUT_DIM, HIDDEN_DIM, OUTPUT_DIM, PREFIX_1)
    p1 = prepare_params(raw1, compute_dtype=jnp.float32)
    x3 = jax.random.normal(kx2, (2, 5, INPUT_DIM), dtype=jnp.float32)
    out3 = jax.block_until_ready(
        mlp_forward(x3, p1, prefix_len=PREFIX_1, output_dim=OUTPUT_DIM, slab=128))
    assert out3.shape == (2, 5, OUTPUT_DIM), out3.shape
    w1, b1, w2, b2, w3, b3 = raw1
    h3 = jnp.maximum(x3 @ w1 + b1, 0.0)
    h3 = jnp.maximum(h3 @ w2 + b2, 0.0)
    ref3 = h3 @ w3 + b3
    assert jnp.allclose(out3, ref3, atol=1e-4, rtol=1e-4), \
        float(jnp.max(jnp.abs(out3 - ref3)))

    print("KERNEL_OK")
</pallas_src>

<mosaic_0001>
module attributes {stable_mosaic.version = 11 : i64} {
  func.func @_mlp_kernel(%arg0: i32, %arg1: i32, %arg2: memref<8x128xf32, #tpu.memory_space<vmem>>, %arg3: memref<128x256xf32, #tpu.memory_space<vmem>>, %arg4: memref<1x256xf32, #tpu.memory_space<vmem>>, %arg5: memref<256x128xf32, #tpu.memory_space<vmem>>, %arg6: memref<1x128xf32, #tpu.memory_space<vmem>>, %arg7: memref<128x256xf32, #tpu.memory_space<vmem>>, %arg8: memref<1x256xf32, #tpu.memory_space<vmem>>, %arg9: memref<8x256xf32, #tpu.memory_space<vmem>>, %arg10: memref<8x256xf32, #tpu.memory_space<vmem>>, %arg11: memref<8x256xf32, #tpu.memory_space<vmem>>) attributes {dimension_semantics = [#tpu.dimension_semantics<arbitrary>, #tpu.dimension_semantics<arbitrary>], iteration_bounds = array<i64: 1, 2>, scalar_prefetch = 0 : i64, scratch_operands = 2 : i64, tpu.core_type = #tpu.core_type<tc>, window_params = [{transform_indices = @transform_0, window_bounds = array<i64: 8, 128>}, {pipeline_mode = #tpu.pipeline_mode<synchronous>, transform_indices = @transform_1, window_bounds = array<i64: 128, 256>}, {pipeline_mode = #tpu.pipeline_mode<synchronous>, transform_indices = @transform_2, window_bounds = array<i64: 1, 256>}, {transform_indices = @transform_3, window_bounds = array<i64: 256, 128>}, {transform_indices = @transform_4, window_bounds = array<i64: 1, 128>}, {transform_indices = @transform_5, window_bounds = array<i64: 128, 256>}, {pipeline_mode = #tpu.pipeline_mode<synchronous>, transform_indices = @transform_6, window_bounds = array<i64: 1, 256>}, {transform_indices = @transform_7, window_bounds = array<i64: 8, 256>}]} {
    %c0_i32 = arith.constant 0 : i32
    %0 = arith.cmpi eq, %arg1, %c0_i32 : i32
    %1 = arith.extui %0 : i1 to i32
    %c0_i32_0 = arith.constant 0 : i32
    %2 = arith.cmpi ne, %1, %c0_i32_0 : i32
    scf.if %2 {
      %c0_15 = arith.constant 0 : index
      %c0_16 = arith.constant 0 : index
      %19 = vector.load %arg2[%c0_15, %c0_16] : memref<8x128xf32, #tpu.memory_space<vmem>>, vector<8x128xf32>
      %c0_17 = arith.constant 0 : index
      %c0_18 = arith.constant 0 : index
      %20 = vector.load %arg3[%c0_17, %c0_18] : memref<128x256xf32, #tpu.memory_space<vmem>>, vector<128x256xf32>
      %cst_19 = arith.constant dense<0.000000e+00> : vector<8x256xf32>
      %21 = tpu.matmul %19, %20, %cst_19 {dimension_numbers = #tpu.dot_dimension_numbers<[1], [0], [0], [1], [0, 0, 1, 1], [], []>} : vector<8x128xf32>, vector<128x256xf32>, vector<8x256xf32> -> vector<8x256xf32>
      %c0_20 = arith.constant 0 : index
      %c0_21 = arith.constant 0 : index
      %22 = vector.load %arg4[%c0_20, %c0_21] : memref<1x256xf32, #tpu.memory_space<vmem>>, vector<1x256xf32>
      %23 = vector.broadcast %22 : vector<1x256xf32> to vector<8x256xf32>
      %24 = arith.addf %21, %23 : vector<8x256xf32>
      %cst_22 = arith.constant 0.000000e+00 : f32
      %25 = vector.broadcast %cst_22 : f32 to vector<8x256xf32>
      %26 = arith.maximumf %24, %25 : vector<8x256xf32>
      %c0_23 = arith.constant 0 : index
      %c0_24 = arith.constant 0 : index
      %27 = vector.load %arg10[%c0_23, %c0_24] : memref<8x256xf32, #tpu.memory_space<vmem>>, vector<8x256xf32>
      tpu.vector_store %arg10[%c0_23, %c0_24], %26 {strides = array<i32>} : memref<8x256xf32, #tpu.memory_space<vmem>>, vector<8x256xf32>,
      %cst_25 = arith.constant 0.000000e+00 : f32
      %28 = vector.broadcast %cst_25 : f32 to vector<8x256xf32>
      %c0_26 = arith.constant 0 : index
      %c0_27 = arith.constant 0 : index
      %29 = vector.load %arg11[%c0_26, %c0_27] : memref<8x256xf32, #tpu.memory_space<vmem>>, vector<8x256xf32>
      tpu.vector_store %arg11[%c0_26, %c0_27], %28 {strides = array<i32>} : memref<8x256xf32, #tpu.memory_space<vmem>>, vector<8x256xf32>,
    } else {
    }
    %c0 = arith.constant 0 : index
    %c0_1 = arith.constant 0 : index
    %3 = vector.load %arg10[%c0, %c0_1] : memref<8x256xf32, #tpu.memory_space<vmem>>, vector<8x256xf32>
    %c0_2 = arith.constant 0 : index
    %c0_3 = arith.constant 0 : index
    %4 = vector.load %arg5[%c0_2, %c0_3] : memref<256x128xf32, #tpu.memory_space<vmem>>, vector<256x128xf32>
    %cst = arith.constant dense<0.000000e+00> : vector<8x128xf32>
    %5 = tpu.matmul %3, %4, %cst {dimension_numbers = #tpu.dot_dimension_numbers<[1], [0], [0], [1], [0, 0, 1, 1], [], []>} : vector<8x256xf32>, vector<256x128xf32>, vector<8x128xf32> -> vector<8x128xf32>
    %c0_4 = arith.constant 0 : index
    %c0_5 = arith.constant 0 : index
    %6 = vector.load %arg6[%c0_4, %c0_5] : memref<1x128xf32, #tpu.memory_space<vmem>>, vector<1x128xf32>
    %7 = vector.broadcast %6 : vector<1x128xf32> to vector<8x128xf32>
    %8 = arith.addf %5, %7 : vector<8x128xf32>
    %cst_6 = arith.constant 0.000000e+00 : f32
    %9 = vector.broadcast %cst_6 : f32 to vector<8x128xf32>
    %10 = arith.maximumf %8, %9 : vector<8x128xf32>
    %c0_7 = arith.constant 0 : index
    %c0_8 = arith.constant 0 : index
    %11 = vector.load %arg11[%c0_7, %c0_8] : memref<8x256xf32, #tpu.memory_space<vmem>>, vector<8x256xf32>
    %c0_9 = arith.constant 0 : index
    %c0_10 = arith.constant 0 : index
    %12 = vector.load %arg7[%c0_9, %c0_10] : memref<128x256xf32, #tpu.memory_space<vmem>>, vector<128x256xf32>
    %cst_11 = arith.constant dense<0.000000e+00> : vector<8x256xf32>
    %13 = tpu.matmul %10, %12, %cst_11 {dimension_numbers = #tpu.dot_dimension_numbers<[1], [0], [0], [1], [0, 0, 1, 1], [], []>} : vector<8x128xf32>, vector<128x256xf32>, vector<8x256xf32> -> vector<8x256xf32>
    %14 = arith.addf %11, %13 : vector<8x256xf32>
    %c0_12 = arith.constant 0 : index
    %c0_13 = arith.constant 0 : index
    %15 = vector.load %arg11[%c0_12, %c0_13] : memref<8x256xf32, #tpu.memory_space<vmem>>, vector<8x256xf32>
    tpu.vector_store %arg11[%c0_12, %c0_13], %14 {strides = array<i32>} : memref<8x256xf32, #tpu.memory_space<vmem>>, vector<8x256xf32>,
    %c1_i32 = arith.constant 1 : i32
    %16 = arith.cmpi eq, %arg1, %c1_i32 : i32
    %17 = arith.extui %16 : i1 to i32
    %c0_i32_14 = arith.constant 0 : i32
    %18 = arith.cmpi ne, %17, %c0_i32_14 : i32
    scf.if %18 {
      %c0_15 = arith.constant 0 : index
      %c0_16 = arith.constant 0 : index
      %19 = vector.load %arg11[%c0_15, %c0_16] : memref<8x256xf32, #tpu.memory_space<vmem>>, vector<8x256xf32>
      %c0_17 = arith.constant 0 : index
      %c0_18 = arith.constant 0 : index
      %20 = vector.load %arg8[%c0_17, %c0_18] : memref<1x256xf32, #tpu.memory_space<vmem>>, vector<1x256xf32>
      %21 = vector.broadcast %20 : vector<1x256xf32> to vector<8x256xf32>
      %22 = arith.addf %19, %21 : vector<8x256xf32>
      %c0_19 = arith.constant 0 : index
      %c0_20 = arith.constant 0 : index
      %23 = vector.load %arg9[%c0_19, %c0_20] : memref<8x256xf32, #tpu.memory_space<vmem>>, vector<8x256xf32>
      tpu.vector_store %arg9[%c0_19, %c0_20], %22 {strides = array<i32>} : memref<8x256xf32, #tpu.memory_space<vmem>>, vector<8x256xf32>,
    } else {
    }
    return
  }
  func.func @transform_0(%arg0: i32, %arg1: i32) -> (i32, i32) {
    %c0_i32 = arith.constant 0 : i32
    %c0_i32_0 = arith.constant 0 : i32
    return %arg0, %c0_i32 : i32, i32
  }
  func.func @transform_1(%arg0: i32, %arg1: i32) -> (i32, i32) {
    %c0_i32 = arith.constant 0 : i32
    %c0_i32_0 = arith.constant 0 : i32
    %c0_i32_1 = arith.constant 0 : i32
    return %c0_i32, %c0_i32_0 : i32, i32
  }
  func.func @transform_2(%arg0: i32, %arg1: i32) -> (i32, i32) {
    %c0_i32 = arith.constant 0 : i32
    %c0_i32_0 = arith.constant 0 : i32
    %c0_i32_1 = arith.constant 0 : i32
    return %c0_i32, %c0_i32_0 : i32, i32
  }
  func.func @transform_3(%arg0: i32, %arg1: i32) -> (i32, i32) {
    %c0_i32 = arith.constant 0 : i32
    %c0_i32_0 = arith.constant 0 : i32
    return %c0_i32, %arg1 : i32, i32
  }
  func.func @transform_4(%arg0: i32, %arg1: i32) -> (i32, i32) {
    %c0_i32 = arith.constant 0 : i32
    %c0_i32_0 = arith.constant 0 : i32
    return %c0_i32, %arg1 : i32, i32
  }
  func.func @transform_5(%arg0: i32, %arg1: i32) -> (i32, i32) {
    %c0_i32 = arith.constant 0 : i32
    %c0_i32_0 = arith.constant 0 : i32
    return %arg1, %c0_i32 : i32, i32
  }
  func.func @transform_6(%arg0: i32, %arg1: i32) -> (i32, i32) {
    %c0_i32 = arith.constant 0 : i32
    %c0_i32_0 = arith.constant 0 : i32
    %c0_i32_1 = arith.constant 0 : i32
    return %c0_i32, %c0_i32_0 : i32, i32
  }
  func.func @transform_7(%arg0: i32, %arg1: i32) -> (i32, i32) {
    %c0_i32 = arith.constant 0 : i32
    %c0_i32_0 = arith.constant 0 : i32
    return %arg0, %c0_i32 : i32, i32
  }
}

</mosaic_0001>

<llo_original>
// kernel: _mlp_forward_impl.1
$region0: #{_mlp_forward_impl.1}
  #allocation0 [shape = 'u32[]', space=smem, size = 0x4, offset = 0x4, fixed_abs, tag = 'smem constant byte address 0x4 - core index']
  #allocation1 [shape = 'u32[144,128]{1,0:T(1,128)}', space=vmem, size = 0x12000, scoped, tag = 'internal scratch']
  #allocation2 [shape = 'f32[8,256]{1,0:T(8,128)}', space=vmem, size = 0x2000, scoped, tag = 'scratch operand']
  #allocation3 [shape = 'f32[8,256]{1,0:T(8,128)}', space=vmem, size = 0x2000, scoped, tag = 'scratch operand']
  %s0 = inlined_call_operand.hbm [shape: f32[8,128], index: 0, kind: input, shape index: {}]
  %s1 = inlined_call_operand.hbm [shape: f32[128,256], index: 1, kind: input, shape index: {}]
  %s2 = inlined_call_operand.vmem [shape: f32[1,256], index: 2, kind: input, shape index: {}]
  %s3 = inlined_call_operand.hbm [shape: f32[256,256], index: 3, kind: input, shape index: {}]
  %s4 = inlined_call_operand.vmem [shape: f32[1,256], index: 4, kind: input, shape index: {}]
  %s5 = inlined_call_operand.hbm [shape: f32[256,256], index: 5, kind: input, shape index: {}]
  %s6 = inlined_call_operand.vmem [shape: f32[1,256], index: 6, kind: input, shape index: {}]
  %s7 = inlined_call_operand.vmem [shape: f32[8,256], index: 7, kind: output, shape index: {}]
  %s8 = sld [smem:[#allocation0]]
  $region85: #{_mlp_forward_impl.1} parent=0
    _
  %s10 = ssub.s32 1, %s8
  %s11 = scalar_select 0, %s10, %s8
  $region1: #{_mlp_forward_impl.1} parent=0
    #allocation4 [shape = 'u8[4096]{0}', space=vmem, size = 0x1000, scoped, tag = 'input window, operand 0, single buffered']
    #allocation5 [shape = 's32[2]{0}', space=sflag, size = 0x8, scoped, tag = 'scoped memory for _mlp_forward_impl.1']
    #allocation6 [shape = 'u8[131072]{0}', space=vmem, size = 0x20000, scoped, tag = 'input window, operand 1, single buffered']
    #allocation7 [shape = 's32[1]{0}', space=sflag, size = 0x4, scoped, tag = 'scoped memory for _mlp_forward_impl.1']
    #allocation8 [shape = 'u8[262144]{0}', space=vmem, size = 0x40000, scoped, tag = 'input window, operand 3']
    #allocation9 [shape = 'u8[262144]{0}', space=vmem, size = 0x40000, scoped, tag = 'input window, operand 5']
    %12 = vsyncpa [#allocation5], 0
    %13 = vsyncpa [#allocation7], 0
    loop: start=0, step=1, limit=4
    $region2: #{_mlp_forward_impl.1} parent=1 // loop_pre_header
      _
    $region3: #{_mlp_forward_impl.1} parent=1 // loop_header
      %s15 = sphi 0, %s19
      %p16 = scmp.ge.s32.totalorder %s15, 4
      %s22 = sphi 0, %s34
      %s23 = sphi 0, %s30
      %s24 = sphi 0, %s22
      %s25 = sphi 0, %s23
      %s26 = sphi 0, %s24
      %s27 = sphi 0, %s25
      %s37 = sphi 0, %s39
      %s40 = sphi 0, %s37
      %s41 = sphi 0, %s40
      %s57 = sphi 0, %s41
      %s61 = sphi 0, %s61
      %s63 = sphi 0, %s61
      %s64 = sphi 0, %s63
      %s78 = sphi 0, %s64
      %s82 = sphi 0, %s82
      %s84 = sphi 0, %s82
      %s85 = sphi 0, %s84
      %s99 = sphi 0, %s85
      %s105 = sphi 0, %s107
      %s108 = sphi 0, %s105
      %s109 = sphi 0, %s108
      %s125 = sphi 0, %s109
      %s131 = sphi 0, %s133
      %s134 = sphi 0, %s131
      %s135 = sphi 0, %s134
      %s151 = sphi 0, %s135
      %s157 = sphi 0, %s159
      %s160 = sphi 0, %s157
      %s161 = sphi 0, %s160
      %s177 = sphi 0, %s161
      %s181 = sphi 0, %s181
      %s183 = sphi 0, %s181
      %s184 = sphi 0, %s183
      %s198 = sphi 0, %s184
      %s204 = sphi 0, %s206
      %s207 = sphi 0, %s204
      %s208 = sphi 0, %s207
      %s224 = sphi 0, %s208
    $region4: #{_mlp_forward_impl.1} parent=1 // loop_header_branch
      %18 = sbr.rel (%p16) target = $region8
    $region5: #{_mlp_forward_impl.1} parent=1 // loop_body
      %s20 = ssub.s32 %s15, 1
      %s21 = ssub.s32 %s15, 2
      %s28 = sadd.s32 1, %s23
      %p29 = scmp.ge.s32.totalorder %s28, 2
      %s30 = scalar_select %p29, 0, %s28
      %s31 = sadd.s32 1, %s22
      %s32 = scalar_select %p29, %s31, %s22
      %p33 = scmp.ge.s32.totalorder %s32, 1
      %s34 = scalar_select %p33, 0, %s32
      %s35 = ssub.s32 %s22, %s34
      %p36 = scmp.eq.s32.totalorder %s35, 0
      %s38 = sadd.s32 %s37, 1
      %s39 = scalar_select %p36, %s37, %s38
      %p42 = pneg %p36
      %p43 = scmp.eq.s32.totalorder %s15, 1
      %p44 = por %p42, %p43
      %p45 = scmp.ne.s32.totalorder %s37, %s40
      %p46 = scmp.eq.s32.totalorder %s15, 0
      %p47 = por %p45, %p46
      %p48 = scmp.ne.s32.totalorder %s37, %s40
      %p49 = scmp.eq.s32.totalorder %s20, 1
      %p50 = por %p48, %p49
      %p51 = scmp.ne.s32.totalorder %s40, %s41
      %p52 = scmp.eq.s32.totalorder %s20, 0
      %p53 = por %p51, %p52
      %p54 = scmp.ne.s32.totalorder %s40, %s41
      %p55 = scmp.eq.s32.totalorder %s21, 1
      %p56 = por %p54, %p55
      %p58 = scmp.ne.s32.totalorder %s41, %s57
      %p59 = scmp.eq.s32.totalorder %s21, 0
      %p60 = por %p58, %p59
      %s62 = sadd.s32 %s61, 1
      %p65 = scmp.eq.s32.totalorder %s15, 1
      %p66 = scmp.ne.s32.totalorder %s61, %s63
      %p67 = scmp.eq.s32.totalorder %s15, 0
      %p68 = por %p66, %p67
      %p69 = scmp.ne.s32.totalorder %s61, %s63
      %p70 = scmp.eq.s32.totalorder %s20, 1
      %p71 = por %p69, %p70
      %p72 = scmp.ne.s32.totalorder %s63, %s64
      %p73 = scmp.eq.s32.totalorder %s20, 0
      %p74 = por %p72, %p73
      %p75 = scmp.ne.s32.totalorder %s63, %s64
      %p76 = scmp.eq.s32.totalorder %s21, 1
      %p77 = por %p75, %p76
      %p79 = scmp.ne.s32.totalorder %s64, %s78
      %p80 = scmp.eq.s32.totalorder %s21, 0
      %p81 = por %p79, %p80
      %s83 = sadd.s32 %s82, 1
      %p86 = scmp.eq.s32.totalorder %s15, 1
      %p87 = scmp.ne.s32.totalorder %s82, %s84
      %p88 = scmp.eq.s32.totalorder %s15, 0
      %p89 = por %p87, %p88
      %p90 = scmp.ne.s32.totalorder %s82, %s84
      %p91 = scmp.eq.s32.totalorder %s20, 1
      %p92 = por %p90, %p91
      %p93 = scmp.ne.s32.totalorder %s84, %s85
      %p94 = scmp.eq.s32.totalorder %s20, 0
      %p95 = por %p93, %p94
      %p96 = scmp.ne.s32.totalorder %s84, %s85
      %p97 = scmp.eq.s32.totalorder %s21, 1
      %p98 = por %p96, %p97
      %p100 = scmp.ne.s32.totalorder %s85, %s99
      %p101 = scmp.eq.s32.totalorder %s21, 0
      %p102 = por %p100, %p101
      %s103 = ssub.s32 %s23, %s30
      %p104 = scmp.eq.s32.totalorder %s103, 0
      %s106 = sadd.s32 %s105, 1
      %s107 = scalar_select %p104, %s105, %s106
      %p110 = pneg %p104
      %p111 = scmp.eq.s32.totalorder %s15, 1
      %p112 = por %p110, %p111
      %p113 = scmp.ne.s32.totalorder %s105, %s108
      %p114 = scmp.eq.s32.totalorder %s15, 0
      %p115 = por %p113, %p114
      %p116 = scmp.ne.s32.totalorder %s105, %s108
      %p117 = scmp.eq.s32.totalorder %s20, 1
      %p118 = por %p116, %p117
      %p119 = scmp.ne.s32.totalorder %s108, %s109
      %p120 = scmp.eq.s32.totalorder %s20, 0
      %p121 = por %p119, %p120
      %p122 = scmp.ne.s32.totalorder %s108, %s109
      %p123 = scmp.eq.s32.totalorder %s21, 1
      %p124 = por %p122, %p123
      %p126 = scmp.ne.s32.totalorder %s109, %s125
      %p127 = scmp.eq.s32.totalorder %s21, 0
      %p128 = por %p126, %p127
      %s129 = ssub.s32 %s23, %s30
      %p130 = scmp.eq.s32.totalorder %s129, 0
      %s132 = sadd.s32 %s131, 1
      %s133 = scalar_select %p130, %s131, %s132
      %p136 = pneg %p130
      %p137 = scmp.eq.s32.totalorder %s15, 1
      %p138 = por %p136, %p137
      %p139 = scmp.ne.s32.totalorder %s131, %s134
      %p140 = scmp.eq.s32.totalorder %s15, 0
      %p141 = por %p139, %p140
      %p142 = scmp.ne.s32.totalorder %s131, %s134
      %p143 = scmp.eq.s32.totalorder %s20, 1
      %p144 = por %p142, %p143
      %p145 = scmp.ne.s32.totalorder %s134, %s135
      %p146 = scmp.eq.s32.totalorder %s20, 0
      %p147 = por %p145, %p146
      %p148 = scmp.ne.s32.totalorder %s134, %s135
      %p149 = scmp.eq.s32.totalorder %s21, 1
      %p150 = por %p148, %p149
      %p152 = scmp.ne.s32.totalorder %s135, %s151
      %p153 = scmp.eq.s32.totalorder %s21, 0
      %p154 = por %p152, %p153
      %s155 = ssub.s32 %s23, %s30
      %p156 = scmp.eq.s32.totalorder %s155, 0
      %s158 = sadd.s32 %s157, 1
      %s159 = scalar_select %p156, %s157, %s158
      %p162 = pneg %p156
      %p163 = scmp.eq.s32.totalorder %s15, 1
      %p164 = por %p162, %p163
      %p165 = scmp.ne.s32.totalorder %s157, %s160
      %p166 = scmp.eq.s32.totalorder %s15, 0
      %p167 = por %p165, %p166
      %p168 = scmp.ne.s32.totalorder %s157, %s160
      %p169 = scmp.eq.s32.totalorder %s20, 1
      %p170 = por %p168, %p169
      %p171 = scmp.ne.s32.totalorder %s160, %s161
      %p172 = scmp.eq.s32.totalorder %s20, 0
      %p173 = por %p171, %p172
      %p174 = scmp.ne.s32.totalorder %s160, %s161
      %p175 = scmp.eq.s32.totalorder %s21, 1
      %p176 = por %p174, %p175
      %p178 = scmp.ne.s32.totalorder %s161, %s177
      %p179 = scmp.eq.s32.totalorder %s21, 0
      %p180 = por %p178, %p179
      %s182 = sadd.s32 %s181, 1
      %p185 = scmp.eq.s32.totalorder %s15, 1
      %p186 = scmp.ne.s32.totalorder %s181, %s183
      %p187 = scmp.eq.s32.totalorder %s15, 0
      %p188 = por %p186, %p187
      %p189 = scmp.ne.s32.totalorder %s181, %s183
      %p190 = scmp.eq.s32.totalorder %s20, 1
      %p191 = por %p189, %p190
      %p192 = scmp.ne.s32.totalorder %s183, %s184
      %p193 = scmp.eq.s32.totalorder %s20, 0
      %p194 = por %p192, %p193
      %p195 = scmp.ne.s32.totalorder %s183, %s184
      %p196 = scmp.eq.s32.totalorder %s21, 1
      %p197 = por %p195, %p196
      %p199 = scmp.ne.s32.totalorder %s184, %s198
      %p200 = scmp.eq.s32.totalorder %s21, 0
      %p201 = por %p199, %p200
      %s202 = ssub.s32 %s22, %s34
      %p203 = scmp.eq.s32.totalorder %s202, 0
      %s205 = sadd.s32 %s204, 1
      %s206 = scalar_select %p203, %s204, %s205
      %p209 = pneg %p203
      %p210 = scmp.eq.s32.totalorder %s15, 1
      %p211 = por %p209, %p210
      %p212 = scmp.ne.s32.totalorder %s204, %s207
      %p213 = scmp.eq.s32.totalorder %s15, 0
      %p214 = por %p212, %p213
      %p215 = scmp.ne.s32.totalorder %s204, %s207
      %p216 = scmp.eq.s32.totalorder %s20, 1
      %p217 = por %p215, %p216
      %p218 = scmp.ne.s32.totalorder %s207, %s208
      %p219 = scmp.eq.s32.totalorder %s20, 0
      %p220 = por %p218, %p219
      %p221 = scmp.ne.s32.totalorder %s207, %s208
      %p222 = scmp.eq.s32.totalorder %s21, 1
      %p223 = por %p221, %p222
      %p225 = scmp.ne.s32.totalorder %s208, %s224
      %p226 = scmp.eq.s32.totalorder %s21, 0
      %p227 = por %p225, %p226
      %p228 = scmp.le.s32.totalorder 1, %s15
      %p229 = scmp.lt.s32.totalorder %s15, 3
      %p230 = pnand %p228, %p229
      %p231 = pneg %p230
      // Predicated region
      $region9: #{_mlp_forward_impl.1} parent=5 // pred_check
        _
      $region10: #{_mlp_forward_impl.1} parent=5 // pred_check_branch
        %233 = sbr.rel (%p230) target = $region12
      $region11: #{_mlp_forward_impl.1} parent=5 // pred_region
        %s234 = ssub.s32 %s15, 1
        // Predicated region
        $region13: #{_mlp_forward_impl.1} parent=11 // pred_check
          %p235 = pneg %p53
        $region14: #{_mlp_forward_impl.1} parent=11 // pred_check_branch
          %237 = sbr.rel (%p235) target = $region16
        $region15: #{_mlp_forward_impl.1} parent=11 // pred_region
          %s239 = ssub.s32 128, 128
          %240 = vsyncadd [#allocation5], %s239
          %s241 = smul.addr %s24, 128
          %s242 = scalar_lea.hbm %s0, %s241
          %s244 = sshll.u32 [#allocation4], 4
          %s245 = int_to_ptr.vmem [resolvable:$true] %s244
          %247 = dma.hbm_to_vmem [thread:$0]  %s242, 128, %s245, [#allocation5]
        $region16: #{_mlp_forward_impl.1} parent=11 // pred_fallthru
          _
        // Predicated region
        $region17: #{_mlp_forward_impl.1} parent=11 // pred_check
          %p248 = pneg %p74
        $region18: #{_mlp_forward_impl.1} parent=11 // pred_check_branch
          %250 = sbr.rel (%p248) target = $region20
        $region19: #{_mlp_forward_impl.1} parent=11 // pred_region
          %s252 = ssub.s32 4096, 4096
          %253 = vsyncadd [#allocation7], %s252
          %s254 = sshll.u32 [#allocation6], 4
          %s255 = int_to_ptr.vmem [resolvable:$true] %s254
          %260 = dma.hbm_to_vmem [thread:$0]  %s1, 4096, %s255, [#allocation7], 256, 256, 16
        $region20: #{_mlp_forward_impl.1} parent=11 // pred_fallthru
          _
        // Predicated region
        $region21: #{_mlp_forward_impl.1} parent=11 // pred_check
          %p261 = pneg %p95
        $region22: #{_mlp_forward_impl.1} parent=11 // pred_check_branch
          %263 = sbr.rel (%p261) target = $region24
        $region23: #{_mlp_forward_impl.1} parent=11 // pred_region
          _
        $region24: #{_mlp_forward_impl.1} parent=11 // pred_fallthru
          _
        // Predicated region
        $region25: #{_mlp_forward_impl.1} parent=11 // pred_check
          %p264 = pneg %p194
        $region26: #{_mlp_forward_impl.1} parent=11 // pred_check_branch
          %266 = sbr.rel (%p264) target = $region28
        $region27: #{_mlp_forward_impl.1} parent=11 // pred_region
          _
        $region28: #{_mlp_forward_impl.1} parent=11 // pred_fallthru
          _
      $region12: #{_mlp_forward_impl.1} parent=5 // pred_fallthru
        _
      %p267 = scmp.lt.s32.totalorder %s15, 2
      // Predicated region
      $region29: #{_mlp_forward_impl.1} parent=5 // pred_check
        %p268 = pneg %p267
      $region30: #{_mlp_forward_impl.1} parent=5 // pred_check_branch
        %270 = sbr.rel (%p268) target = $region32
      $region31: #{_mlp_forward_impl.1} parent=5 // pred_region
        // Predicated region
        $region33: #{_mlp_forward_impl.1} parent=31 // pred_check
          %p271 = pneg %p115
        $region34: #{_mlp_forward_impl.1} parent=31 // pred_check_branch
          %273 = sbr.rel (%p271) target = $region36
        $region35: #{_mlp_forward_impl.1} parent=31 // pred_region
          %s274 = sand.u32 %s15, 1
          %s275 = scalar_lea.sflag [#allocation5], %s274
          %s276 = sand.u32 %s105, 1
          %s277 = smul.addr %s276, 256
          %s278 = scalar_lea.vmem [#allocation8], %s277
          %s280 = ssub.s32 4096, 4096
          %281 = vsyncadd %s275, %s280
          %s282 = smul.addr %s23, 128
          %s283 = scalar_lea.hbm %s3, %s282
          %s284 = sshll.u32 %s278, 4
          %s285 = int_to_ptr.vmem [resolvable:$true] %s284
          %290 = dma.hbm_to_vmem [thread:$0]  %s283, 4096, %s285, %s275, 256, 128, 8
        $region36: #{_mlp_forward_impl.1} parent=31 // pred_fallthru
          _
        // Predicated region
        $region37: #{_mlp_forward_impl.1} parent=31 // pred_check
          %p291 = pneg %p141
        $region38: #{_mlp_forward_impl.1} parent=31 // pred_check_branch
          %293 = sbr.rel (%p291) target = $region40
        $region39: #{_mlp_forward_impl.1} parent=31 // pred_region
          %p294 = scmp.lt.s32.totalorder %s23, 1
          %s295 = scalar_select %p294, %s23, 1
          %s296 = scalar_lea.vmem %s4, %s295
        $region40: #{_mlp_forward_impl.1} parent=31 // pred_fallthru
          _
        // Predicated region
        $region41: #{_mlp_forward_impl.1} parent=31 // pred_check
          %p297 = pneg %p167
        $region42: #{_mlp_forward_impl.1} parent=31 // pred_check_branch
          %299 = sbr.rel (%p297) target = $region44
        $region43: #{_mlp_forward_impl.1} parent=31 // pred_region
          %s300 = sand.u32 %s15, 1
          %s301 = scalar_lea.sflag [#allocation5], %s300
          %s302 = sand.u32 %s157, 1
          %s303 = smul.addr %s302, 256
          %s304 = scalar_lea.vmem [#allocation9], %s303
          %s305 = smul.u32 16, %s23
          %s307 = ssub.s32 4096, 4096
          %308 = vsyncadd %s301, %s307
          %s309 = smul.addr %s305, 2
          %s310 = smul.addr %s309, 128
          %s311 = scalar_lea.hbm %s5, %s310
          %s312 = sshll.u32 %s304, 4
          %s313 = int_to_ptr.vmem [resolvable:$true] %s312
          %318 = dma.hbm_to_vmem [thread:$0]  %s311, 4096, %s313, %s301, 256, 256, 16
        $region44: #{_mlp_forward_impl.1} parent=31 // pred_fallthru
          _
      $region32: #{_mlp_forward_impl.1} parent=5 // pred_fallthru
        _
      %p319 = scmp.le.s32.totalorder 1, %s15
      %p320 = scmp.lt.s32.totalorder %s15, 3
      %p321 = pnand %p319, %p320
      %p322 = pneg %p321
      // Predicated region
      $region45: #{_mlp_forward_impl.1} parent=5 // pred_check
        _
      $region46: #{_mlp_forward_impl.1} parent=5 // pred_check_branch
        %324 = sbr.rel (%p321) target = $region48
      $region47: #{_mlp_forward_impl.1} parent=5 // pred_region
        %s325 = ssub.s32 %s15, 1
        // Predicated region
        $region49: #{_mlp_forward_impl.1} parent=47 // pred_check
          %p326 = pneg %p53
        $region50: #{_mlp_forward_impl.1} parent=47 // pred_check_branch
          %328 = sbr.rel (%p326) target = $region52
        $region51: #{_mlp_forward_impl.1} parent=47 // pred_region
          %329 = dma.done [#allocation5], 128
        $region52: #{_mlp_forward_impl.1} parent=47 // pred_fallthru
          _
        // Predicated region
        $region53: #{_mlp_forward_impl.1} parent=47 // pred_check
          %p330 = pneg %p74
        $region54: #{_mlp_forward_impl.1} parent=47 // pred_check_branch
          %332 = sbr.rel (%p330) target = $region56
        $region55: #{_mlp_forward_impl.1} parent=47 // pred_region
          %333 = dma.done [#allocation7], 4096
        $region56: #{_mlp_forward_impl.1} parent=47 // pred_fallthru
          _
        %s334 = sand.u32 %s20, 1
        %s335 = scalar_lea.sflag [#allocation5], %s334
        %s336 = sand.u32 %s108, 1
        %s337 = smul.addr %s336, 256
        %s338 = scalar_lea.vmem [#allocation8], %s337
        // Predicated region
        $region57: #{_mlp_forward_impl.1} parent=47 // pred_check
          %p339 = pneg %p121
        $region58: #{_mlp_forward_impl.1} parent=47 // pred_check_branch
          %341 = sbr.rel (%p339) target = $region60
        $region59: #{_mlp_forward_impl.1} parent=47 // pred_region
          %342 = dma.done %s335, 4096
        $region60: #{_mlp_forward_impl.1} parent=47 // pred_fallthru
          _
        %s343 = sand.u32 %s20, 1
        %s344 = scalar_lea.sflag [#allocation5], %s343
        %s345 = sand.u32 %s160, 1
        %s346 = smul.addr %s345, 256
        %s347 = scalar_lea.vmem [#allocation9], %s346
        // Predicated region
        $region61: #{_mlp_forward_impl.1} parent=47 // pred_check
          %p348 = pneg %p173
        $region62: #{_mlp_forward_impl.1} parent=47 // pred_check_branch
          %350 = sbr.rel (%p348) target = $region64
        $region63: #{_mlp_forward_impl.1} parent=47 // pred_region
          %351 = dma.done %s344, 4096
        $region64: #{_mlp_forward_impl.1} parent=47 // pred_fallthru
          _
        %p352 = pneg %p53
        %p353 = pneg %p50
        %p354 = pneg %p74
        %p355 = pneg %p71
        %p356 = pneg %p95
        %p357 = pneg %p92
        %s358 = sand.u32 %s20, 1
        %s359 = scalar_lea.sflag [#allocation5], %s358
        %s360 = sand.u32 %s108, 1
        %s361 = smul.addr %s360, 256
        %s362 = scalar_lea.vmem [#allocation8], %s361
        %p363 = pneg %p121
        %p364 = pneg %p118
        %p365 = scmp.lt.s32.totalorder %s25, 1
        %s366 = scalar_select %p365, %s25, 1
        %s367 = scalar_lea.vmem %s4, %s366
        %p368 = pneg %p147
        %p369 = pneg %p144
        %s370 = sand.u32 %s20, 1
        %s371 = scalar_lea.sflag [#allocation5], %s370
        %s372 = sand.u32 %s160, 1
        %s373 = smul.addr %s372, 256
        %s374 = scalar_lea.vmem [#allocation9], %s373
        %p375 = pneg %p173
        %p376 = pneg %p170
        %p377 = pneg %p194
        %p378 = pneg %p191
        %p379 = pneg %p220
        %p380 = pneg %p217
        %p381 = scmp.lt.s32.totalorder %s24, 0
        %s382 = scalar_select %p381, %s24, 0
        %s383 = smul.addr %s382, 2
        %s384 = smul.addr %s383, 8
        %s385 = scalar_lea.vmem %s7, %s384
        %p386 = scmp.lt.s32.totalorder %s25, 1
        %s387 = scalar_select %p386, %s25, 1
        %s388 = scalar_lea.vmem %s4, %s387
        %s389 = smul.u32 16, %s25
        %p390 = scmp.lt.s32.totalorder %s24, 0
        %s391 = scalar_select %p390, %s24, 0
        %s392 = smul.addr %s391, 2
        %s393 = smul.addr %s392, 8
        %s394 = scalar_lea.vmem %s7, %s393
        %p395 = scmp.eq.s32.totalorder %s25, 0
        // Predicated region
        $region65: #{_mlp_forward_impl.1} parent=47 // pred_check
          %p396 = pneg %p395
        $region66: #{_mlp_forward_impl.1} parent=47 // pred_check_branch
          %398 = sbr.rel (%p396) target = $region68
        $region67: #{_mlp_forward_impl.1} parent=47 // pred_region
          %v399 = vld [vmem:[#allocation4] sm:$0xff]
          %v400 = vld [vmem:[#allocation6] sm:$0xff]
          %v401 = vld [vmem:[#allocation6 + $0x8] sm:$0xff]
          %v402 = vld [vmem:[#allocation6 + $0x10] sm:$0xff]
          %v403 = vld [vmem:[#allocation6 + $0x18] sm:$0xff]
          %v404 = vld [vmem:[#allocation6 + $0x20] sm:$0xff]
          %v405 = vld [vmem:[#allocation6 + $0x28] sm:$0xff]
          %v406 = vld [vmem:[#allocation6 + $0x30] sm:$0xff]
          %v407 = vld [vmem:[#allocation6 + $0x38] sm:$0xff]
          %v408 = vld [vmem:[#allocation6 + $0x40] sm:$0xff]
          %v409 = vld [vmem:[#allocation6 + $0x48] sm:$0xff]
          %v410 = vld [vmem:[#allocation6 + $0x50] sm:$0xff]
          %v411 = vld [vmem:[#allocation6 + $0x58] sm:$0xff]
          %v412 = vld [vmem:[#allocation6 + $0x60] sm:$0xff]
          %v413 = vld [vmem:[#allocation6 + $0x68] sm:$0xff]
          %v414 = vld [vmem:[#allocation6 + $0x70] sm:$0xff]
          %v415 = vld [vmem:[#allocation6 + $0x78] sm:$0xff]
          %v416 = vld [vmem:[#allocation6 + $0x80] sm:$0xff]
          %v417 = vld [vmem:[#allocation6 + $0x88] sm:$0xff]
          %v418 = vld [vmem:[#allocation6 + $0x90] sm:$0xff]
          %v419 = vld [vmem:[#allocation6 + $0x98] sm:$0xff]
          %v420 = vld [vmem:[#allocation6 + $0xa0] sm:$0xff]
          %v421 = vld [vmem:[#allocation6 + $0xa8] sm:$0xff]
          %v422 = vld [vmem:[#allocation6 + $0xb0] sm:$0xff]
          %v423 = vld [vmem:[#allocation6 + $0xb8] sm:$0xff]
          %v424 = vld [vmem:[#allocation6 + $0xc0] sm:$0xff]
          %v425 = vld [vmem:[#allocation6 + $0xc8] sm:$0xff]
          %v426 = vld [vmem:[#allocation6 + $0xd0] sm:$0xff]
          %v427 = vld [vmem:[#allocation6 + $0xd8] sm:$0xff]
          %v428 = vld [vmem:[#allocation6 + $0xe0] sm:$0xff]
          %v429 = vld [vmem:[#allocation6 + $0xe8] sm:$0xff]
          %v430 = vld [vmem:[#allocation6 + $0xf0] sm:$0xff]
          %v431 = vld [vmem:[#allocation6 + $0xf8] sm:$0xff]
          %v432 = vld [vmem:[%s2] sm:$0x3]
          %v434 = vlaneseq
          %v435 = vshrl.u32 %v434, 7
          %v436 = vsub.s32 0, %v435
          %v437 = vrot.slane %v432, %v436
          %v438 = vlaneseq
          %v439 = vshrl.u32 %v438, 7
          %v440 = vsub.s32 1, %v439
          %v441 = vrot.slane %v432, %v440
          %444 = vmatprep.subr.mxu0 %v431
          %445 = vmatpush1.msra.mxu0 %v430
          %446 = vmatprep.subr.mxu0 %v429
          %447 = vmatpush1.msra.mxu0 %v428
          %448 = vmatprep.subr.mxu0 %v427
          %449 = vmatpush1.msra.mxu0 %v426
          %450 = vmatprep.subr.mxu0 %v425
          %451 = vmatpush1.msra.mxu0 %v424
          %452 = vmatprep.subr.mxu0 %v423
          %453 = vmatpush1.msra.mxu0 %v422
          %454 = vmatprep.subr.mxu0 %v421
          %455 = vmatpush1.msra.mxu0 %v420
          %456 = vmatprep.subr.mxu0 %v419
          %457 = vmatpush1.msra.mxu0 %v418
          %458 = vmatprep.subr.mxu0 %v417
          %459 = vmatpush1.msra.mxu0 %v416
          %460 = vmatprep.subr.mxu0 %v415
          %461 = vmatpush1.msra.mxu0 %v414
          %462 = vmatprep.subr.mxu0 %v413
          %463 = vmatpush1.msra.mxu0 %v412
          %464 = vmatprep.subr.mxu0 %v411
          %465 = vmatpush1.msra.mxu0 %v410
          %466 = vmatprep.subr.mxu0 %v409
          %467 = vmatpush1.msra.mxu0 %v408
          %468 = vmatprep.subr.mxu0 %v407
          %469 = vmatpush1.msra.mxu0 %v406
          %470 = vmatprep.subr.mxu0 %v405
          %471 = vmatpush1.msra.mxu0 %v404
          %472 = vmatprep.subr.mxu0 %v403
          %473 = vmatpush1.msra.mxu0 %v402
          %474 = vmatprep.subr.mxu0 %v401
          %475 = vmatpush1.msra.mxu0 %v400
          %476 = vmatprep.subr.mxu0 0.0
          %477 = vmatpush2.msra.mxu0 0.0
          %478 = vmatprep.subr.mxu0 0.0
          %479 = vmatpush2.msra.mxu0 0.0
          %480 = vmatprep.subr.mxu0 0.0
          %481 = vmatpush2.msra.mxu0 0.0
          %482 = vmatprep.subr.mxu0 0.0
          %483 = vmatpush2.msra.mxu0 0.0
          %484 = vmatprep.subr.mxu0 0.0
          %485 = vmatpush2.msra.mxu0 0.0
          %486 = vmatprep.subr.mxu0 0.0
          %487 = vmatpush2.msra.mxu0 0.0
          %488 = vmatprep.subr.mxu0 0.0
          %489 = vmatpush2.msra.mxu0 0.0
          %490 = vmatprep.subr.mxu0 0.0
          %491 = vmatpush2.msra.mxu0 0.0
          %492 = vmatprep.subr.mxu0 0.0
          %493 = vmatpush2.msra.mxu0 0.0
          %494 = vmatprep.subr.mxu0 0.0
          %495 = vmatpush2.msra.mxu0 0.0
          %496 = vmatprep.subr.mxu0 0.0
          %497 = vmatpush2.msra.mxu0 0.0
          %498 = vmatprep.subr.mxu0 0.0
          %499 = vmatpush2.msra.mxu0 0.0
          %500 = vmatprep.subr.mxu0 0.0
          %501 = vmatpush2.msra.mxu0 0.0
          %502 = vmatprep.subr.mxu0 0.0
          %503 = vmatpush2.msra.mxu0 0.0
          %504 = vmatprep.subr.mxu0 0.0
          %505 = vmatpush2.msra.mxu0 0.0
          %506 = vmatprep.subr.mxu0 0.0
          %507 = vmatpush2.msra.mxu0 0.0
          %508 = vmatprep.mubr.f32.mxu0 0.0
          %509 = vmatmul.mubr.f32.gmra.mxu0 %v399
          %v510 = vpop.f32.mrf.mxu0
          %v511 = vadd.f32 %v437, %v510
          %v512 = vpop.f32.mrf.mxu0
          %v513 = vadd.f32 %v441, %v512
          %514 = vdwg.mxu0
          %v515 = vmax.f32 %v511, 0.0
          %v516 = vmax.f32 %v513, 0.0
          %517 = vst [vmem:[#allocation2] sm:$0xff] %v515
          %518 = vst [vmem:[#allocation2 + $0x8] sm:$0xff] %v516
          %519 = vst [vmem:[#allocation3] sm:$0xff] 0.0
          %520 = vst [vmem:[#allocation3 + $0x8] sm:$0xff] 0.0
        $region68: #{_mlp_forward_impl.1} parent=47 // pred_fallthru
          _
        %v521 = vld [vmem:[#allocation2] sm:$0xff]
        %v522 = vld [vmem:[#allocation2 + $0x8] sm:$0xff]
        %v523 = vld [vmem:[%s338] sm:$0xff]
        %v524 = vld [vmem:[%s338 + $0x8] sm:$0xff]
        %v525 = vld [vmem:[%s338 + $0x10] sm:$0xff]
        %v526 = vld [vmem:[%s338 + $0x18] sm:$0xff]
        %v527 = vld [vmem:[%s338 + $0x20] sm:$0xff]
        %v528 = vld [vmem:[%s338 + $0x28] sm:$0xff]
        %v529 = vld [vmem:[%s338 + $0x30] sm:$0xff]
        %v530 = vld [vmem:[%s338 + $0x38] sm:$0xff]
        %v531 = vld [vmem:[%s338 + $0x40] sm:$0xff]
        %v532 = vld [vmem:[%s338 + $0x48] sm:$0xff]
        %v533 = vld [vmem:[%s338 + $0x50] sm:$0xff]
        %v534 = vld [vmem:[%s338 + $0x58] sm:$0xff]
        %v535 = vld [vmem:[%s338 + $0x60] sm:$0xff]
        %v536 = vld [vmem:[%s338 + $0x68] sm:$0xff]
        %v537 = vld [vmem:[%s338 + $0x70] sm:$0xff]
        %v538 = vld [vmem:[%s338 + $0x78] sm:$0xff]
        %v539 = vld [vmem:[%s338 + $0x80] sm:$0xff]
        %v540 = vld [vmem:[%s338 + $0x88] sm:$0xff]
        %v541 = vld [vmem:[%s338 + $0x90] sm:$0xff]
        %v542 = vld [vmem:[%s338 + $0x98] sm:$0xff]
        %v543 = vld [vmem:[%s338 + $0xa0] sm:$0xff]
        %v544 = vld [vmem:[%s338 + $0xa8] sm:$0xff]
        %v545 = vld [vmem:[%s338 + $0xb0] sm:$0xff]
        %v546 = vld [vmem:[%s338 + $0xb8] sm:$0xff]
        %v547 = vld [vmem:[%s338 + $0xc0] sm:$0xff]
        %v548 = vld [vmem:[%s338 + $0xc8] sm:$0xff]
        %v549 = vld [vmem:[%s338 + $0xd0] sm:$0xff]
        %v550 = vld [vmem:[%s338 + $0xd8] sm:$0xff]
        %v551 = vld [vmem:[%s338 + $0xe0] sm:$0xff]
        %v552 = vld [vmem:[%s338 + $0xe8] sm:$0xff]
        %v553 = vld [vmem:[%s338 + $0xf0] sm:$0xff]
        %v554 = vld [vmem:[%s338 + $0xf8] sm:$0xff]
        %v555 = vld [vmem:[%s388] sm:$0x1]
        %v557 = vlaneseq
        %v558 = vshrl.u32 %v557, 7
        %v559 = vsub.s32 0, %v558
        %v560 = vrot.slane %v555, %v559
        %562 = vmatprep.subr.mxu0 0.0
        %563 = vmatpush1.msra.mxu0 %v538
        %564 = vmatprep.subr.mxu0 0.0
        %565 = vmatpush1.msra.mxu0 %v537
        %566 = vmatprep.subr.mxu0 0.0
        %567 = vmatpush1.msra.mxu0 %v536
        %568 = vmatprep.subr.mxu0 0.0
        %569 = vmatpush1.msra.mxu0 %v535
        %570 = vmatprep.subr.mxu0 0.0
        %571 = vmatpush1.msra.mxu0 %v534
        %572 = vmatprep.subr.mxu0 0.0
        %573 = vmatpush1.msra.mxu0 %v533
        %574 = vmatprep.subr.mxu0 0.0
        %575 = vmatpush1.msra.mxu0 %v532
        %576 = vmatprep.subr.mxu0 0.0
        %577 = vmatpush1.msra.mxu0 %v531
        %578 = vmatprep.subr.mxu0 0.0
        %579 = vmatpush1.msra.mxu0 %v530
        %580 = vmatprep.subr.mxu0 0.0
        %581 = vmatpush1.msra.mxu0 %v529
        %582 = vmatprep.subr.mxu0 0.0
        %583 = vmatpush1.msra.mxu0 %v528
        %584 = vmatprep.subr.mxu0 0.0
        %585 = vmatpush1.msra.mxu0 %v527
        %586 = vmatprep.subr.mxu0 0.0
        %587 = vmatpush1.msra.mxu0 %v526
        %588 = vmatprep.subr.mxu0 0.0
        %589 = vmatpush1.msra.mxu0 %v525
        %590 = vmatprep.subr.mxu0 0.0
        %591 = vmatpush1.msra.mxu0 %v524
        %592 = vmatprep.subr.mxu0 0.0
        %593 = vmatpush1.msra.mxu0 %v523
        %594 = vmatprep.subr.mxu0 0.0
        %595 = vmatpush2.msra.mxu0 %v554
        %596 = vmatprep.subr.mxu0 0.0
        %597 = vmatpush2.msra.mxu0 %v553
        %598 = vmatprep.subr.mxu0 0.0
        %599 = vmatpush2.msra.mxu0 %v552
        %600 = vmatprep.subr.mxu0 0.0
        %601 = vmatpush2.msra.mxu0 %v551
        %602 = vmatprep.subr.mxu0 0.0
        %603 = vmatpush2.msra.mxu0 %v550
        %604 = vmatprep.subr.mxu0 0.0
        %605 = vmatpush2.msra.mxu0 %v549
        %606 = vmatprep.subr.mxu0 0.0
        %607 = vmatpush2.msra.mxu0 %v548
        %608 = vmatprep.subr.mxu0 0.0
        %609 = vmatpush2.msra.mxu0 %v547
        %610 = vmatprep.subr.mxu0 0.0
        %611 = vmatpush2.msra.mxu0 %v546
        %612 = vmatprep.subr.mxu0 0.0
        %613 = vmatpush2.msra.mxu0 %v545
        %614 = vmatprep.subr.mxu0 0.0
        %615 = vmatpush2.msra.mxu0 %v544
        %616 = vmatprep.subr.mxu0 0.0
        %617 = vmatpush2.msra.mxu0 %v543
        %618 = vmatprep.subr.mxu0 0.0
        %619 = vmatpush2.msra.mxu0 %v542
        %620 = vmatprep.subr.mxu0 0.0
        %621 = vmatpush2.msra.mxu0 %v541
        %622 = vmatprep.subr.mxu0 0.0
        %623 = vmatpush2.msra.mxu0 %v540
        %624 = vmatprep.subr.mxu0 0.0
        %625 = vmatpush2.msra.mxu0 %v539
        %626 = vmatprep.mubr.f32.mxu0 %v522
        %627 = vmatmul.mubr.f32.gmra.mxu0 %v521
        %v628 = vpop.f32.mrf.mxu0
        %v629 = vadd.f32 %v560, %v628
        %v630 = vpop.f32.mrf.mxu0
        %631 = vdwg.mxu0
        %v632 = vmax.f32 %v629, 0.0
        %v633 = vld [vmem:[#allocation3] sm:$0xff]
        %v634 = vld [vmem:[#allocation3 + $0x8] sm:$0xff]
        %v635 = vld [vmem:[%s347] sm:$0xff]
        %v636 = vld [vmem:[%s347 + $0x8] sm:$0xff]
        %v637 = vld [vmem:[%s347 + $0x10] sm:$0xff]
        %v638 = vld [vmem:[%s347 + $0x18] sm:$0xff]
        %v639 = vld [vmem:[%s347 + $0x20] sm:$0xff]
        %v640 = vld [vmem:[%s347 + $0x28] sm:$0xff]
        %v641 = vld [vmem:[%s347 + $0x30] sm:$0xff]
        %v642 = vld [vmem:[%s347 + $0x38] sm:$0xff]
        %v643 = vld [vmem:[%s347 + $0x40] sm:$0xff]
        %v644 = vld [vmem:[%s347 + $0x48] sm:$0xff]
        %v645 = vld [vmem:[%s347 + $0x50] sm:$0xff]
        %v646 = vld [vmem:[%s347 + $0x58] sm:$0xff]
        %v647 = vld [vmem:[%s347 + $0x60] sm:$0xff]
        %v648 = vld [vmem:[%s347 + $0x68] sm:$0xff]
        %v649 = vld [vmem:[%s347 + $0x70] sm:$0xff]
        %v650 = vld [vmem:[%s347 + $0x78] sm:$0xff]
        %v651 = vld [vmem:[%s347 + $0x80] sm:$0xff]
        %v652 = vld [vmem:[%s347 + $0x88] sm:$0xff]
        %v653 = vld [vmem:[%s347 + $0x90] sm:$0xff]
        %v654 = vld [vmem:[%s347 + $0x98] sm:$0xff]
        %v655 = vld [vmem:[%s347 + $0xa0] sm:$0xff]
        %v656 = vld [vmem:[%s347 + $0xa8] sm:$0xff]
        %v657 = vld [vmem:[%s347 + $0xb0] sm:$0xff]
        %v658 = vld [vmem:[%s347 + $0xb8] sm:$0xff]
        %v659 = vld [vmem:[%s347 + $0xc0] sm:$0xff]
        %v660 = vld [vmem:[%s347 + $0xc8] sm:$0xff]
        %v661 = vld [vmem:[%s347 + $0xd0] sm:$0xff]
        %v662 = vld [vmem:[%s347 + $0xd8] sm:$0xff]
        %v663 = vld [vmem:[%s347 + $0xe0] sm:$0xff]
        %v664 = vld [vmem:[%s347 + $0xe8] sm:$0xff]
        %v665 = vld [vmem:[%s347 + $0xf0] sm:$0xff]
        %v666 = vld [vmem:[%s347 + $0xf8] sm:$0xff]
        %667 = vmatprep.subr.mxu0 %v666
        %668 = vmatpush1.msra.mxu0 %v665
        %669 = vmatprep.subr.mxu0 %v664
        %670 = vmatpush1.msra.mxu0 %v663
        %671 = vmatprep.subr.mxu0 %v662
        %672 = vmatpush1.msra.mxu0 %v661
        %673 = vmatprep.subr.mxu0 %v660
        %674 = vmatpush1.msra.mxu0 %v659
        %675 = vmatprep.subr.mxu0 %v658
        %676 = vmatpush1.msra.mxu0 %v657
        %677 = vmatprep.subr.mxu0 %v656
        %678 = vmatpush1.msra.mxu0 %v655
        %679 = vmatprep.subr.mxu0 %v654
        %680 = vmatpush1.msra.mxu0 %v653
        %681 = vmatprep.subr.mxu0 %v652
        %682 = vmatpush1.msra.mxu0 %v651
        %683 = vmatprep.subr.mxu0 %v650
        %684 = vmatpush1.msra.mxu0 %v649
        %685 = vmatprep.subr.mxu0 %v648
        %686 = vmatpush1.msra.mxu0 %v647
        %687 = vmatprep.subr.mxu0 %v646
        %688 = vmatpush1.msra.mxu0 %v645
        %689 = vmatprep.subr.mxu0 %v644
        %690 = vmatpush1.msra.mxu0 %v643
        %691 = vmatprep.subr.mxu0 %v642
        %692 = vmatpush1.msra.mxu0 %v641
        %693 = vmatprep.subr.mxu0 %v640
        %694 = vmatpush1.msra.mxu0 %v639
        %695 = vmatprep.subr.mxu0 %v638
        %696 = vmatpush1.msra.mxu0 %v637
        %697 = vmatprep.subr.mxu0 %v636
        %698 = vmatpush1.msra.mxu0 %v635
        %699 = vmatprep.subr.mxu0 0.0
        %700 = vmatpush2.msra.mxu0 0.0
        %701 = vmatprep.subr.mxu0 0.0
        %702 = vmatpush2.msra.mxu0 0.0
        %703 = vmatprep.subr.mxu0 0.0
        %704 = vmatpush2.msra.mxu0 0.0
        %705 = vmatprep.subr.mxu0 0.0
        %706 = vmatpush2.msra.mxu0 0.0
        %707 = vmatprep.subr.mxu0 0.0
        %708 = vmatpush2.msra.mxu0 0.0
        %709 = vmatprep.subr.mxu0 0.0
        %710 = vmatpush2.msra.mxu0 0.0
        %711 = vmatprep.subr.mxu0 0.0
        %712 = vmatpush2.msra.mxu0 0.0
        %713 = vmatprep.subr.mxu0 0.0
        %714 = vmatpush2.msra.mxu0 0.0
        %715 = vmatprep.subr.mxu0 0.0
        %716 = vmatpush2.msra.mxu0 0.0
        %717 = vmatprep.subr.mxu0 0.0
        %718 = vmatpush2.msra.mxu0 0.0
        %719 = vmatprep.subr.mxu0 0.0
        %720 = vmatpush2.msra.mxu0 0.0
        %721 = vmatprep.subr.mxu0 0.0
        %722 = vmatpush2.msra.mxu0 0.0
        %723 = vmatprep.subr.mxu0 0.0
        %724 = vmatpush2.msra.mxu0 0.0
        %725 = vmatprep.subr.mxu0 0.0
        %726 = vmatpush2.msra.mxu0 0.0
        %727 = vmatprep.subr.mxu0 0.0
        %728 = vmatpush2.msra.mxu0 0.0
        %729 = vmatprep.subr.mxu0 0.0
        %730 = vmatpush2.msra.mxu0 0.0
        %731 = vmatprep.mubr.f32.mxu0 0.0
        %732 = vmatmul.mubr.f32.gmra.mxu0 %v632
        %v733 = vpop.f32.mrf.mxu0
        %v734 = vadd.f32 0.0, %v733
        %v735 = vpop.f32.mrf.mxu0
        %v736 = vadd.f32 0.0, %v735
        %737 = vdwg.mxu0
        %v738 = vadd.f32 %v633, %v734
        %v739 = vadd.f32 %v634, %v736
        %740 = vst [vmem:[#allocation3] sm:$0xff] %v738
        %741 = vst [vmem:[#allocation3 + $0x8] sm:$0xff] %v739
        %p742 = scmp.eq.s32.totalorder %s25, 1
        // Predicated region
        $region69: #{_mlp_forward_impl.1} parent=47 // pred_check
          %p743 = pneg %p742
        $region70: #{_mlp_forward_impl.1} parent=47 // pred_check_branch
          %745 = sbr.rel (%p743) target = $region72
        $region71: #{_mlp_forward_impl.1} parent=47 // pred_region
          %v746 = vld [vmem:[#allocation3] sm:$0xff]
          %v747 = vld [vmem:[#allocation3 + $0x8] sm:$0xff]
          %v748 = vld [vmem:[%s6] sm:$0x3]
          %v750 = vlaneseq
          %v751 = vshrl.u32 %v750, 7
          %v752 = vsub.s32 0, %v751
          %v753 = vrot.slane %v748, %v752
          %v754 = vlaneseq
          %v755 = vshrl.u32 %v754, 7
          %v756 = vsub.s32 1, %v755
          %v757 = vrot.slane %v748, %v756
          %v760 = vadd.f32 %v746, %v753
          %v761 = vadd.f32 %v747, %v757
          %762 = vst [vmem:[%s394] sm:$0xff] %v760
          %763 = vst [vmem:[%s394 + $0x8] sm:$0xff] %v761
        $region72: #{_mlp_forward_impl.1} parent=47 // pred_fallthru
          _
        %p764 = scmp.lt.s32.totalorder %s24, 0
        %s765 = scalar_select %p764, %s24, 0
        %s766 = smul.addr %s765, 2
        %s767 = smul.addr %s766, 8
        %s768 = scalar_lea.vmem %s7, %s767
        // Predicated region
        $region73: #{_mlp_forward_impl.1} parent=47 // pred_check
          %p769 = pneg %p217
        $region74: #{_mlp_forward_impl.1} parent=47 // pred_check_branch
          %771 = sbr.rel (%p769) target = $region76
        $region75: #{_mlp_forward_impl.1} parent=47 // pred_region
          _
        $region76: #{_mlp_forward_impl.1} parent=47 // pred_fallthru
          _
        // Predicated region
        $region77: #{_mlp_forward_impl.1} parent=47 // pred_check
          %p772 = pneg %p217
        $region78: #{_mlp_forward_impl.1} parent=47 // pred_check_branch
          %774 = sbr.rel (%p772) target = $region80
        $region79: #{_mlp_forward_impl.1} parent=47 // pred_region
          %p775 = scmp.lt.s32.totalorder %s24, 0
          %s776 = scalar_select %p775, %s24, 0
          %s777 = smul.addr %s776, 2
          %s778 = smul.addr %s777, 8
          %s779 = scalar_lea.vmem %s7, %s778
        $region80: #{_mlp_forward_impl.1} parent=47 // pred_fallthru
          _
      $region48: #{_mlp_forward_impl.1} parent=5 // pred_fallthru
        _
      %p780 = scmp.le.s32.totalorder 2, %s15
      // Predicated region
      $region81: #{_mlp_forward_impl.1} parent=5 // pred_check
        %p781 = pneg %p780
      $region82: #{_mlp_forward_impl.1} parent=5 // pred_check_branch
        %783 = sbr.rel (%p781) target = $region84
      $region83: #{_mlp_forward_impl.1} parent=5 // pred_region
        %s784 = ssub.s32 %s15, 2
      $region84: #{_mlp_forward_impl.1} parent=5 // pred_fallthru
        _
    $region6: #{_mlp_forward_impl.1} parent=1 // loop_footer
      %s19 = sadd.s32 1, %s15
    $region7: #{_mlp_forward_impl.1} parent=1 // loop_footer_branch
      %14 = sbr.rel target = $region3
    $region8: #{_mlp_forward_impl.1} parent=1 // loop_exit
      _
    %785 = vsyncpa [#allocation5], 1
    %s786 = scalar_lea.sflag [#allocation5], 1
    %787 = vsyncpa %s786, 1
    %788 = vsyncpa [#allocation7], 1

</llo_original>
